<compile_context>
chip_gen: v7x
topology: tpu7x:2x2x1
jax: 0.10.0
libtpu: 0.0.40
codegen_flags: <defaults>
</compile_context>

<pallas_src>
import functools

import jax
import jax.numpy as jnp
from jax import lax
from jax.experimental import pallas as pl
from jax.experimental.pallas import tpu as pltpu

NEG_SLOPE = 0.01
BN_EPS = 1e-5

# Packed-parameter row layout for the (16, 128) "pack" block.
_ROW_B0, _ROW_GAMMA, _ROW_BETA, _ROW_B1, _ROW_B2, _ROW_B3, _ROW_W4, _ROW_B4 = range(8)
_ROW_W1A = 8  # rows 8..11 hold w1a (4, 128)


def _leaky_relu(x):
    return jnp.where(x >= 0, x, NEG_SLOPE * x)


def _round_up(x, m):
    return ((x + m - 1) // m) * m


# ----------------------------------------------------------------------------- kernels

def _phase1_kernel(s_ref, w0_ref, pack_ref, h_ref, stats_ref, *, batch, tile_b, mxu_dtype):
    """h = s @ W0 + b0 per tile; accumulate masked full-batch sum / sum-of-squares."""
    i = pl.program_id(0)

    s = s_ref[...]                                           # (tile_b, 48) f32
    h = jnp.dot(s.astype(mxu_dtype), w0_ref[...],
                preferred_element_type=jnp.float32) + pack_ref[_ROW_B0:_ROW_B0 + 1, :]
    h_ref[...] = h                                           # (tile_b, 128) f32

    # Mask padded rows (rows >= batch) out of the BatchNorm statistics.
    row = i * tile_b + lax.broadcasted_iota(jnp.int32, (tile_b, 1), 0)
    hm = jnp.where(row < batch, h, 0.0)

    @pl.when(i == 0)
    def _():
        stats_ref[...] = jnp.zeros_like(stats_ref)

    stats_ref[0:1, :] += jnp.sum(hm, axis=0, keepdims=True)
    stats_ref[1:2, :] += jnp.sum(hm * hm, axis=0, keepdims=True)


def _phase2_kernel(h_ref, a_ref, stats_ref, pack_ref, w1s_ref, w2_ref, w3_ref, out_ref,
                   *, batch, mxu_dtype):
    """Fused BN + leaky-ReLU + fc1..fc4 for one batch tile."""
    h = h_ref[...]                                           # (tile_b, 128) f32
    a = a_ref[...]                                           # (tile_b, 4)   f32

    # Fused BatchNorm affine from one-pass statistics (biased variance).
    inv_b = jnp.float32(1.0 / batch)
    mean = stats_ref[0:1, :] * inv_b
    ex2 = stats_ref[1:2, :] * inv_b
    var = jnp.maximum(ex2 - mean * mean, 0.0)
    scale = pack_ref[_ROW_GAMMA:_ROW_GAMMA + 1, :] * lax.rsqrt(var + BN_EPS)
    shift = pack_ref[_ROW_BETA:_ROW_BETA + 1, :] - mean * scale
    h = _leaky_relu(h * scale + shift)

    # fc1 (132 -> 128): 128-wide state part on the MXU, 4 action inputs as VPU FMAs.
    x = jnp.dot(h.astype(mxu_dtype), w1s_ref[...],
                preferred_element_type=jnp.float32) + pack_ref[_ROW_B1:_ROW_B1 + 1, :]
    for k in range(4):
        x = x + a[:, k:k + 1] * pack_ref[_ROW_W1A + k:_ROW_W1A + k + 1, :]
    x = _leaky_relu(x)

    # fc2 (128 -> 128)
    x = _leaky_relu(jnp.dot(x.astype(mxu_dtype), w2_ref[...],
                            preferred_element_type=jnp.float32) + pack_ref[_ROW_B2:_ROW_B2 + 1, :])
    # fc3 (128 -> 64), weight zero-padded to 128 output lanes (padded lanes stay 0).
    x = _leaky_relu(jnp.dot(x.astype(mxu_dtype), w3_ref[...],
                            preferred_element_type=jnp.float32) + pack_ref[_ROW_B3:_ROW_B3 + 1, :])

    # fc4 (64 -> 1) as VPU multiply + cross-lane reduction; w4 row is zero past col 64.
    q = jnp.sum(x * pack_ref[_ROW_W4:_ROW_W4 + 1, :], axis=-1, keepdims=True)   # (tile_b, 1)
    # b4 is replicated across all 128 lanes of its pack row -> lane-dense unmasked store.
    out_ref[...] = q + pack_ref[_ROW_B4:_ROW_B4 + 1, :]                          # (tile_b, 128)


# ----------------------------------------------------------------------------- params

def init_params(key, state_size=24, action_size=2, hidden_sizes=(128, 128, 64)):
    """Deterministic PyTorch-style (uniform +/- 1/sqrt(fan_in)) initialization."""
    def linear(k, fan_in, fan_out):
        kw, kb = jax.random.split(k)
        bound = 1.0 / (fan_in ** 0.5)
        w = jax.random.uniform(kw, (fan_in, fan_out), jnp.float32, -bound, bound)
        b = jax.random.uniform(kb, (fan_out,), jnp.float32, -bound, bound)
        return w, b

    keys = jax.random.split(key, 5)
    p = {}
    p["w0"], p["b0"] = linear(keys[0], state_size * 2, 128)          # preprocess_fcStates
    p["gamma"] = jnp.ones((128,), jnp.float32)                       # bn1 affine
    p["beta"] = jnp.zeros((128,), jnp.float32)
    p["w1"], p["b1"] = linear(keys[1], 128 + 2 * action_size, hidden_sizes[0])
    p["w2"], p["b2"] = linear(keys[2], hidden_sizes[0], hidden_sizes[1])
    p["w3"], p["b3"] = linear(keys[3], hidden_sizes[1], hidden_sizes[2])
    p["w4"], p["b4"] = linear(keys[4], hidden_sizes[2], 1)
    return p


def _prepare_kernel_params(params, mxu_dtype):
    """Kernel-side layout: resident weight matrices + one packed (16,128) vector block."""
    w1 = params["w1"]                                                # (132, 128)
    w3p = jnp.zeros((128, 128), jnp.float32).at[:, :64].set(params["w3"])

    pack = jnp.zeros((16, 128), jnp.float32)
    pack = pack.at[_ROW_B0].set(params["b0"])
    pack = pack.at[_ROW_GAMMA].set(params["gamma"])
    pack = pack.at[_ROW_BETA].set(params["beta"])
    pack = pack.at[_ROW_B1].set(params["b1"])
    pack = pack.at[_ROW_B2].set(params["b2"])
    pack = pack.at[_ROW_B3, :64].set(params["b3"])
    pack = pack.at[_ROW_W4, :64].set(params["w4"][:, 0])
    pack = pack.at[_ROW_B4].set(jnp.full((128,), params["b4"][0], jnp.float32))
    pack = pack.at[_ROW_W1A:_ROW_W1A + 4].set(w1[128:, :])           # action part of fc1

    return dict(
        w0=params["w0"].astype(mxu_dtype),
        w1s=w1[:128, :].astype(mxu_dtype),
        w2=params["w2"].astype(mxu_dtype),
        w3p=w3p.astype(mxu_dtype),
        pack=pack,                                                   # stays f32
    )


# ----------------------------------------------------------------------------- wrapper

def maddpg_central_critic(states, actions, params, *, tile_b=512, mxu_dtype=jnp.float32):
    """states: reshapeable to (B, 48); actions: reshapeable to (B, 4). Returns (B, 1)."""
    s = states.reshape(-1, 48).astype(jnp.float32)
    a = actions.reshape(-1, 4).astype(jnp.float32)
    B = s.shape[0]

    # Batch tile: multiple of 8 sublanes, capped so (2 buffers x ~1.3 KB/row of live
    # activations) + ~130 KB resident weights stays far below v7x's 32 MiB scoped VMEM.
    tb = _round_up(min(tile_b, _round_up(B, 8)), 8)
    B_pad = _round_up(B, tb)
    num_tiles = B_pad // tb
    if B_pad != B:
        s = jnp.pad(s, ((0, B_pad - B), (0, 0)))
        a = jnp.pad(a, ((0, B_pad - B), (0, 0)))

    kp = _prepare_kernel_params(params, mxu_dtype)
    resident = lambda i: (0, 0)   # weight blocks: same block every step -> no re-DMA

    # ---- Phase 1: preprocess linear + full-batch BN statistics (masked accumulation).
    h, stats = pl.pallas_call(
        functools.partial(_phase1_kernel, batch=B, tile_b=tb, mxu_dtype=mxu_dtype),
        out_shape=(jax.ShapeDtypeStruct((B_pad, 128), jnp.float32),   # h
                   jax.ShapeDtypeStruct((2, 128), jnp.float32)),      # [sum; sum_sq]
        grid=(num_tiles,),
        in_specs=[
            pl.BlockSpec((tb, 48), lambda i: (i, 0)),                 # states tile
            pl.BlockSpec((48, 128), resident),                        # W0
            pl.BlockSpec((16, 128), resident),                        # packed vectors
        ],
        out_specs=(
            pl.BlockSpec((tb, 128), lambda i: (i, 0)),
            pl.BlockSpec((2, 128), resident),                         # accumulator
        ),
        compiler_params=pltpu.CompilerParams(
            dimension_semantics=("arbitrary",),                       # stats accumulator
            vmem_limit_bytes=32 * 1024 * 1024,
        ),
    )(s, kp["w0"], kp["pack"])

    # ---- Phase 2: fused BN + leaky-ReLU + fc1..fc4, batch-parallel.
    out = pl.pallas_call(
        functools.partial(_phase2_kernel, batch=B, mxu_dtype=mxu_dtype),
        out_shape=jax.ShapeDtypeStruct((B_pad, 128), jnp.float32),    # lane-dense slab
        grid=(num_tiles,),
        in_specs=[
            pl.BlockSpec((tb, 128), lambda i: (i, 0)),                # h tile
            pl.BlockSpec((tb, 4), lambda i: (i, 0)),                  # actions tile
            pl.BlockSpec((2, 128), resident),                         # BN stats
            pl.BlockSpec((16, 128), resident),                        # packed vectors
            pl.BlockSpec((128, 128), resident),                       # W1 (state part)
            pl.BlockSpec((128, 128), resident),                       # W2
            pl.BlockSpec((128, 128), resident),                       # W3 (padded)
        ],
        out_specs=pl.BlockSpec((tb, 128), lambda i: (i, 0)),
        compiler_params=pltpu.CompilerParams(
            dimension_semantics=("parallel",),                        # shards across v7x TCs
            vmem_limit_bytes=32 * 1024 * 1024,
        ),
    )(h, a, stats, kp["pack"], kp["w1s"], kp["w2"], kp["w3p"])

    return out[:B, :1]


# ----------------------------------------------------------------------------- reference

def reference_forward(states, actions, params):
    """Pure-JAX reference (PyTorch training-mode BatchNorm semantics)."""
    s = states.reshape(-1, 48).astype(jnp.float32)
    a = actions.reshape(-1, 4).astype(jnp.float32)
    h = s @ params["w0"] + params["b0"]
    mean = jnp.mean(h, axis=0, keepdims=True)
    var = jnp.mean((h - mean) ** 2, axis=0, keepdims=True)
    h = (h - mean) / jnp.sqrt(var + BN_EPS)
    h = h * params["gamma"] + params["beta"]
    h = jnp.where(h >= 0, h, NEG_SLOPE * h)
    x = jnp.concatenate([h, a], axis=1) @ params["w1"] + params["b1"]
    x = jnp.where(x >= 0, x, NEG_SLOPE * x)
    x = x @ params["w2"] + params["b2"]
    x = jnp.where(x >= 0, x, NEG_SLOPE * x)
    x = x @ params["w3"] + params["b3"]
    x = jnp.where(x >= 0, x, NEG_SLOPE * x)
    return x @ params["w4"] + params["b4"]


if __name__ == "__main__":
    key = jax.random.PRNGKey(0)
    k_param, k_state, k_action = jax.random.split(key, 3)
    params = init_params(k_param)

    # Small case: B=8, two agents -> states (8,2,24), actions (8,2,2). Single tile.
    B, N_AGENTS = 8, 2
    states = jax.random.normal(k_state, (B, N_AGENTS, 24), jnp.float32)
    actions = jax.random.uniform(k_action, (B, N_AGENTS, 2), jnp.float32, -1.0, 1.0)

    q = jax.block_until_ready(maddpg_central_critic(states, actions, params))
    q_ref = reference_forward(states, actions, params)
    assert q.shape == (B, 1), q.shape
    assert jnp.allclose(q, q_ref, atol=1e-4, rtol=1e-4), float(jnp.max(jnp.abs(q - q_ref)))

    # Multi-tile case exercising padding + masked full-batch BN stats:
    # B=300 with tile_b=128 -> 3 tiles, 84 padded rows masked out of the statistics.
    B2 = 300
    k_s2, k_a2 = jax.random.split(k_state)
    states2 = jax.random.normal(k_s2, (B2, N_AGENTS, 24), jnp.float32)
    actions2 = jax.random.uniform(k_a2, (B2, N_AGENTS, 2), jnp.float32, -1.0, 1.0)

    q2 = jax.block_until_ready(maddpg_central_critic(states2, actions2, params, tile_b=128))
    q2_ref = reference_forward(states2, actions2, params)
    assert q2.shape == (B2, 1), q2.shape
    assert jnp.allclose(q2, q2_ref, atol=1e-3, rtol=1e-3), float(jnp.max(jnp.abs(q2 - q2_ref)))

    # Optional bf16 MXU-weight path (v6e/v7x); elementwise / BN math stays f32.
    q2_bf16 = jax.block_until_ready(
        maddpg_central_critic(states2, actions2, params, tile_b=128, mxu_dtype=jnp.bfloat16))
    assert jnp.allclose(q2_bf16, q2_ref, atol=0.15, rtol=0.15), \
        float(jnp.max(jnp.abs(q2_bf16 - q2_ref)))

    print("KERNEL_OK")
</pallas_src>

<mosaic_0001>
module attributes {stable_mosaic.version = 11 : i64} {
  func.func @_phase1_kernel(%arg0: i32, %arg1: memref<8x48xf32, #tpu.memory_space<vmem>>, %arg2: memref<48x128xf32, #tpu.memory_space<vmem>>, %arg3: memref<16x128xf32, #tpu.memory_space<vmem>>, %arg4: memref<8x128xf32, #tpu.memory_space<vmem>>, %arg5: memref<2x128xf32, #tpu.memory_space<vmem>>) attributes {dimension_semantics = [#tpu.dimension_semantics<arbitrary>], iteration_bounds = array<i64: 1>, scalar_prefetch = 0 : i64, scratch_operands = 0 : i64, tpu.core_type = #tpu.core_type<tc>, window_params = [{transform_indices = @transform_0, window_bounds = array<i64: 8, 48>}, {pipeline_mode = #tpu.pipeline_mode<synchronous>, transform_indices = @transform_1, window_bounds = array<i64: 48, 128>}, {pipeline_mode = #tpu.pipeline_mode<synchronous>, transform_indices = @transform_2, window_bounds = array<i64: 16, 128>}, {transform_indices = @transform_3, window_bounds = array<i64: 8, 128>}, {pipeline_mode = #tpu.pipeline_mode<synchronous>, transform_indices = @transform_4, window_bounds = array<i64: 2, 128>}]} {
    %c0 = arith.constant 0 : index
    %c0_0 = arith.constant 0 : index
    %0 = vector.load %arg1[%c0, %c0_0] : memref<8x48xf32, #tpu.memory_space<vmem>>, vector<8x48xf32>
    %c0_1 = arith.constant 0 : index
    %c0_2 = arith.constant 0 : index
    %1 = vector.load %arg2[%c0_1, %c0_2] : memref<48x128xf32, #tpu.memory_space<vmem>>, vector<48x128xf32>
    %cst = arith.constant dense<0.000000e+00> : vector<8x128xf32>
    %2 = tpu.matmul %0, %1, %cst {dimension_numbers = #tpu.dot_dimension_numbers<[1], [0], [0], [1], [0, 0, 1, 1], [], []>} : vector<8x48xf32>, vector<48x128xf32>, vector<8x128xf32> -> vector<8x128xf32>
    %c0_3 = arith.constant 0 : index
    %c0_4 = arith.constant 0 : index
    %3 = vector.load %arg3[%c0_3, %c0_4] : memref<16x128xf32, #tpu.memory_space<vmem>>, vector<1x128xf32>
    %4 = vector.broadcast %3 : vector<1x128xf32> to vector<8x128xf32>
    %5 = arith.addf %2, %4 : vector<8x128xf32>
    %c0_5 = arith.constant 0 : index
    %c0_6 = arith.constant 0 : index
    %6 = vector.load %arg4[%c0_5, %c0_6] : memref<8x128xf32, #tpu.memory_space<vmem>>, vector<8x128xf32>
    tpu.vector_store %arg4[%c0_5, %c0_6], %5 {strides = array<i32>} : memref<8x128xf32, #tpu.memory_space<vmem>>, vector<8x128xf32>,
    %c8_i32 = arith.constant 8 : i32
    %7 = arith.muli %arg0, %c8_i32 : i32
    %8 = tpu.iota {dimensions = array<i32: 0>} : vector<8x1xi32>
    %9 = vector.broadcast %7 : i32 to vector<8x1xi32>
    %10 = arith.addi %9, %8 : vector<8x1xi32>
    %c8_i32_7 = arith.constant 8 : i32
    %11 = vector.broadcast %c8_i32_7 : i32 to vector<8x1xi32>
    %12 = arith.cmpi slt, %10, %11 : vector<8x1xi32>
    %cst_8 = arith.constant 0.000000e+00 : f32
    %13 = vector.shape_cast %12 : vector<8x1xi1> to vector<8x1xi1>
    %14 = vector.broadcast %13 : vector<8x1xi1> to vector<8x128xi1>
    %15 = vector.broadcast %cst_8 : f32 to vector<8x128xf32>
    %16 = arith.select %14, %5, %15 : vector<8x128xi1>, vector<8x128xf32>
    %c0_i32 = arith.constant 0 : i32
    %17 = arith.cmpi eq, %arg0, %c0_i32 : i32
    %18 = arith.extui %17 : i1 to i32
    %c0_i32_9 = arith.constant 0 : i32
    %19 = arith.cmpi ne, %18, %c0_i32_9 : i32
    scf.if %19 {
      %cst_19 = arith.constant 0.000000e+00 : f32
      %31 = vector.broadcast %cst_19 : f32 to vector<2x128xf32>
      %c0_20 = arith.constant 0 : index
      %c0_21 = arith.constant 0 : index
      %32 = vector.load %arg5[%c0_20, %c0_21] : memref<2x128xf32, #tpu.memory_space<vmem>>, vector<2x128xf32>
      tpu.vector_store %arg5[%c0_20, %c0_21], %31 {strides = array<i32>} : memref<2x128xf32, #tpu.memory_space<vmem>>, vector<2x128xf32>,
    } else {
    }
    %c0_10 = arith.constant 0 : index
    %c0_11 = arith.constant 0 : index
    %20 = vector.load %arg5[%c0_10, %c0_11] : memref<2x128xf32, #tpu.memory_space<vmem>>, vector<1x128xf32>
    %cst_12 = arith.constant dense<0.000000e+00> : vector<128xf32>
    %21 = vector.multi_reduction <add>, %16, %cst_12 [0] : vector<8x128xf32> to vector<128xf32>
    %22 = vector.shape_cast %21 : vector<128xf32> to vector<1x128xf32>
    %23 = arith.addf %20, %22 : vector<1x128xf32>
    %c0_13 = arith.constant 0 : index
    %c0_14 = arith.constant 0 : index
    %24 = vector.load %arg5[%c0_13, %c0_14] : memref<2x128xf32, #tpu.memory_space<vmem>>, vector<1x128xf32>
    tpu.vector_store %arg5[%c0_13, %c0_14], %23 {strides = array<i32>} : memref<2x128xf32, #tpu.memory_space<vmem>>, vector<1x128xf32>,
    %c1 = arith.constant 1 : index
    %c0_15 = arith.constant 0 : index
    %25 = vector.load %arg5[%c1, %c0_15] : memref<2x128xf32, #tpu.memory_space<vmem>>, vector<1x128xf32>
    %26 = arith.mulf %16, %16 : vector<8x128xf32>
    %cst_16 = arith.constant dense<0.000000e+00> : vector<128xf32>
    %27 = vector.multi_reduction <add>, %26, %cst_16 [0] : vector<8x128xf32> to vector<128xf32>
    %28 = vector.shape_cast %27 : vector<128xf32> to vector<1x128xf32>
    %29 = arith.addf %25, %28 : vector<1x128xf32>
    %c1_17 = arith.constant 1 : index
    %c0_18 = arith.constant 0 : index
    %30 = vector.load %arg5[%c1_17, %c0_18] : memref<2x128xf32, #tpu.memory_space<vmem>>, vector<1x128xf32>
    tpu.vector_store %arg5[%c1_17, %c0_18], %29 {strides = array<i32>} : memref<2x128xf32, #tpu.memory_space<vmem>>, vector<1x128xf32>,
    return
  }
  func.func @transform_0(%arg0: i32) -> (i32, i32) {
    %c0_i32 = arith.constant 0 : i32
    %c0_i32_0 = arith.constant 0 : i32
    return %arg0, %c0_i32 : i32, i32
  }
  func.func @transform_1(%arg0: i32) -> (i32, i32) {
    %c0_i32 = arith.constant 0 : i32
    %c0_i32_0 = arith.constant 0 : i32
    %c0_i32_1 = arith.constant 0 : i32
    return %c0_i32, %c0_i32_0 : i32, i32
  }
  func.func @transform_2(%arg0: i32) -> (i32, i32) {
    %c0_i32 = arith.constant 0 : i32
    %c0_i32_0 = arith.constant 0 : i32
    %c0_i32_1 = arith.constant 0 : i32
    return %c0_i32, %c0_i32_0 : i32, i32
  }
  func.func @transform_3(%arg0: i32) -> (i32, i32) {
    %c0_i32 = arith.constant 0 : i32
    %c0_i32_0 = arith.constant 0 : i32
    return %arg0, %c0_i32 : i32, i32
  }
  func.func @transform_4(%arg0: i32) -> (i32, i32) {
    %c0_i32 = arith.constant 0 : i32
    %c0_i32_0 = arith.constant 0 : i32
    %c0_i32_1 = arith.constant 0 : i32
    return %c0_i32, %c0_i32_0 : i32, i32
  }
}

</mosaic_0001>

<llo_original>
// kernel: tpu_custom_call.1
$region0: #{tpu_custom_call.1}
  #allocation0 [shape = 'u32[]', space=smem, size = 0x4, offset = 0x4, fixed_abs, tag = 'smem constant byte address 0x4 - core index']
  #allocation1 [shape = 'u32[144,128]{1,0:T(1,128)}', space=vmem, size = 0x12000, scoped, tag = 'internal scratch']
  %s0 = inlined_call_operand.hbm [shape: f32[8,48], index: 0, kind: input, shape index: {}]
  %s1 = inlined_call_operand.hbm [shape: f32[48,128], index: 1, kind: input, shape index: {}]
  %s2 = inlined_call_operand.hbm [shape: f32[16,128], index: 2, kind: input, shape index: {}]
  %s3 = inlined_call_operand.hbm [shape: f32[8,128], index: 3, kind: output, shape index: {0}]
  %s4 = inlined_call_operand.hbm [shape: f32[2,128], index: 4, kind: output, shape index: {1}]
  %5 = xla_tuple %s3, %s4
  %s6 = sld [smem:[#allocation0]]
  $region46: #{tpu_custom_call.1} parent=0
    _
  %s8 = ssub.s32 1, %s6
  %s9 = scalar_select 0, %s8, %s6
  $region1: #{tpu_custom_call.1} parent=0
    #allocation2 [shape = 'u8[4096]{0}', space=vmem, size = 0x1000, scoped, tag = 'input window, operand 0, single buffered']
    #allocation3 [shape = 's32[1]{0}', space=sflag, size = 0x4, scoped, tag = 'scoped memory for tpu_custom_call.1']
    #allocation4 [shape = 's32[1]{0}', space=sflag, size = 0x4, scoped, tag = 'scoped memory for tpu_custom_call.1']
    #allocation5 [shape = 'u8[24576]{0}', space=vmem, size = 0x6000, scoped, tag = 'input window, operand 1, single buffered']
    #allocation6 [shape = 's32[1]{0}', space=sflag, size = 0x4, scoped, tag = 'scoped memory for tpu_custom_call.1']
    #allocation7 [shape = 'u8[8192]{0}', space=vmem, size = 0x2000, scoped, tag = 'input window, operand 2, single buffered']
    #allocation8 [shape = 'u8[4096]{0}', space=vmem, size = 0x1000, scoped, tag = 'output window, operand 0, single buffered']
    #allocation9 [shape = 'u8[1024]{0}', space=vmem, size = 0x400, scoped, tag = 'output window, operand 1, single buffered']
    #allocation10 [shape = 's32[1]{0}', space=sflag, size = 0x4, scoped, tag = 'scoped memory for tpu_custom_call.1']
    %10 = vsyncpa [#allocation3], 0
    %11 = vsyncpa [#allocation6], 0
    %12 = vsyncpa [#allocation4], 0
    %13 = vsyncpa [#allocation10], 0
    // Predicated region
    $region2: #{tpu_custom_call.1} parent=1 // pred_check
      _
    $region3: #{tpu_custom_call.1} parent=1 // pred_check_branch
      %15 = sbr.rel (0) target = $region5
    $region4: #{tpu_custom_call.1} parent=1 // pred_region
      %s17 = ssub.s32 128, 128
      %18 = vsyncadd [#allocation3], %s17
      %s20 = sshll.u32 [#allocation2], 4
      %s21 = int_to_ptr.vmem [resolvable:$true] %s20
      %23 = dma.hbm_to_vmem [thread:$0]  %s0, 128, %s21, [#allocation3]
    $region5: #{tpu_custom_call.1} parent=1 // pred_fallthru
      _
    // Predicated region
    $region6: #{tpu_custom_call.1} parent=1 // pred_check
      _
    $region7: #{tpu_custom_call.1} parent=1 // pred_check_branch
      %25 = sbr.rel (0) target = $region9
    $region8: #{tpu_custom_call.1} parent=1 // pred_region
      %s27 = ssub.s32 768, 768
      %28 = vsyncadd [#allocation6], %s27
      %s29 = sshll.u32 [#allocation5], 4
      %s30 = int_to_ptr.vmem [resolvable:$true] %s29
      %35 = dma.hbm_to_vmem [thread:$0]  %s1, 768, %s30, [#allocation6], 128, 128, 8
    $region9: #{tpu_custom_call.1} parent=1 // pred_fallthru
      _
    // Predicated region
    $region10: #{tpu_custom_call.1} parent=1 // pred_check
      _
    $region11: #{tpu_custom_call.1} parent=1 // pred_check_branch
      %37 = sbr.rel (0) target = $region13
    $region12: #{tpu_custom_call.1} parent=1 // pred_region
      %s39 = ssub.s32 256, 256
      %40 = vsyncadd [#allocation6], %s39
      %s41 = sshll.u32 [#allocation7], 4
      %s42 = int_to_ptr.vmem [resolvable:$true] %s41
      %47 = dma.hbm_to_vmem [thread:$0]  %s2, 256, %s42, [#allocation6], 128, 128, 8
    $region13: #{tpu_custom_call.1} parent=1 // pred_fallthru
      _
    // Predicated region
    $region14: #{tpu_custom_call.1} parent=1 // pred_check
      _
    $region15: #{tpu_custom_call.1} parent=1 // pred_check_branch
      %49 = sbr.rel (0) target = $region17
    $region16: #{tpu_custom_call.1} parent=1 // pred_region
      %50 = dma.done [#allocation3], 128
    $region17: #{tpu_custom_call.1} parent=1 // pred_fallthru
      _
    // Predicated region
    $region18: #{tpu_custom_call.1} parent=1 // pred_check
      _
    $region19: #{tpu_custom_call.1} parent=1 // pred_check_branch
      %52 = sbr.rel (0) target = $region21
    $region20: #{tpu_custom_call.1} parent=1 // pred_region
      %53 = dma.done [#allocation6], 768
    $region21: #{tpu_custom_call.1} parent=1 // pred_fallthru
      _
    // Predicated region
    $region22: #{tpu_custom_call.1} parent=1 // pred_check
      _
    $region23: #{tpu_custom_call.1} parent=1 // pred_check_branch
      %55 = sbr.rel (0) target = $region25
    $region24: #{tpu_custom_call.1} parent=1 // pred_region
      %56 = dma.done [#allocation6], 256
    $region25: #{tpu_custom_call.1} parent=1 // pred_fallthru
      _
    %v57 = vld [vmem:[#allocation2] sm:$0xff]
    %v58 = vld [vmem:[#allocation5] sm:$0xff]
    %v59 = vld [vmem:[#allocation5 + $0x8] sm:$0xff]
    %v60 = vld [vmem:[#allocation5 + $0x10] sm:$0xff]
    %v61 = vld [vmem:[#allocation5 + $0x18] sm:$0xff]
    %v62 = vld [vmem:[#allocation5 + $0x20] sm:$0xff]
    %v63 = vld [vmem:[#allocation5 + $0x28] sm:$0xff]
    %v64 = vld [vmem:[#allocation7] sm:$0x1]
    %v65 = vlaneseq
    %v66 = vshrl.u32 %v65, 7
    %v67 = vsub.s32 0, %v66
    %v68 = vrot.slane %v64, %v67
    %vm69 = vcmask 392192
    %v71 = vsel %vm69, %v57, 0
    %73 = vmatprep.subr.mxu0 0.0
    %74 = vmatpush1.msra.mxu0 %v58
    %75 = vmatprep.subr.mxu0 0.0
    %76 = vmatpush1.msra.mxu0 %v59
    %77 = vmatprep.subr.mxu0 0.0
    %78 = vmatpush1.msra.mxu0 %v60
    %79 = vmatprep.subr.mxu0 0.0
    %80 = vmatpush1.msra.mxu0 %v61
    %81 = vmatprep.subr.mxu0 0.0
    %82 = vmatpush1.msra.mxu0 %v62
    %83 = vmatprep.subr.mxu0 0.0
    %84 = vmatpush1.msra.mxu0 %v63
    %85 = vmatprep.subr.mxu0 0.0
    %86 = vmatpush1.msra.mxu0 0.0
    %87 = vmatprep.subr.mxu0 0.0
    %88 = vmatpush1.msra.mxu0 0.0
    %89 = vmatprep.subr.mxu0 0.0
    %90 = vmatpush1.msra.mxu0 0.0
    %91 = vmatprep.subr.mxu0 0.0
    %92 = vmatpush1.msra.mxu0 0.0
    %93 = vmatprep.subr.mxu0 0.0
    %94 = vmatpush1.msra.mxu0 0.0
    %95 = vmatprep.subr.mxu0 0.0
    %96 = vmatpush1.msra.mxu0 0.0
    %97 = vmatprep.subr.mxu0 0.0
    %98 = vmatpush1.msra.mxu0 0.0
    %99 = vmatprep.subr.mxu0 0.0
    %100 = vmatpush1.msra.mxu0 0.0
    %101 = vmatprep.subr.mxu0 0.0
    %102 = vmatpush1.msra.mxu0 0.0
    %103 = vmatprep.subr.mxu0 0.0
    %104 = vmatpush1.msra.mxu0 0.0
    %105 = vmatprep.subr.mxu0 0.0
    %106 = vmatpush1.msra.mxu0 0.0
    %107 = vmatprep.subr.mxu0 0.0
    %108 = vmatpush1.msra.mxu0 0.0
    %109 = vmatprep.subr.mxu0 0.0
    %110 = vmatpush1.msra.mxu0 0.0
    %111 = vmatprep.subr.mxu0 0.0
    %112 = vmatpush1.msra.mxu0 0.0
    %113 = vmatprep.subr.mxu0 0.0
    %114 = vmatpush1.msra.mxu0 0.0
    %115 = vmatprep.subr.mxu0 0.0
    %116 = vmatpush1.msra.mxu0 0.0
    %117 = vmatprep.subr.mxu0 0.0
    %118 = vmatpush1.msra.mxu0 0.0
    %119 = vmatprep.subr.mxu0 0.0
    %120 = vmatpush1.msra.mxu0 0.0
    %121 = vmatprep.subr.mxu0 0.0
    %122 = vmatpush1.msra.mxu0 0.0
    %123 = vmatprep.subr.mxu0 0.0
    %124 = vmatpush1.msra.mxu0 0.0
    %125 = vmatprep.subr.mxu0 0.0
    %126 = vmatpush1.msra.mxu0 0.0
    %127 = vmatprep.subr.mxu0 0.0
    %128 = vmatpush1.msra.mxu0 0.0
    %129 = vmatprep.subr.mxu0 0.0
    %130 = vmatpush1.msra.mxu0 0.0
    %131 = vmatprep.subr.mxu0 0.0
    %132 = vmatpush1.msra.mxu0 0.0
    %133 = vmatprep.subr.mxu0 0.0
    %134 = vmatpush1.msra.mxu0 0.0
    %135 = vmatprep.subr.mxu0 0.0
    %136 = vmatpush1.msra.mxu0 0.0
    %137 = vmatprep.mubr.f32.mxu0 0.0
    %138 = vmatmul.mubr.f32.gmra.mrb[0].mxu0 %v71
    %v139 = vpop.f32.mrb[0].mxu0
    %v140 = vadd.f32 %v68, %v139
    %v141 = vpop.f32.mrb[0].mxu0
    %142 = vdwg.mxu0
    %143 = vst [vmem:[#allocation8] sm:$0xff] %v140
    %s144 = smul.u32 0, 8
    %v145 = vlaneseq
    %v146 = vshrl.u32 %v145, 7
    %v147 = vstv %s144
    %v148 = vadd.s32 %v147, %v146
    %vm149 = vcmp.lt.s32.totalorder %v148, 8
    %v150 = vsel %vm149, 1, 0
    %vm151 = vcmp.eq.s32.totalorder %v150, 1
    %v152 = vsel %vm151, %v140, 0.0
    %p153 = scmp.eq.s32.totalorder 0, 0
    // Predicated region
    $region26: #{tpu_custom_call.1} parent=1 // pred_check
      %p154 = pneg %p153
    $region27: #{tpu_custom_call.1} parent=1 // pred_check_branch
      %156 = sbr.rel (%p154) target = $region29
    $region28: #{tpu_custom_call.1} parent=1 // pred_region
      %157 = vst [vmem:[#allocation9] sm:$0x3] 0.0
    $region29: #{tpu_custom_call.1} parent=1 // pred_fallthru
      _
    %v158 = vld [vmem:[#allocation9] sm:$0x1]
    %v159 = vrot.slane %v152, 4
    %v160 = vadd.f32 %v152, %v159
    %v161 = vrot.slane %v160, 2
    %v162 = vadd.f32 %v160, %v161
    %v163 = vrot.slane %v162, 1
    %v164 = vadd.f32 %v162, %v163
    %v165 = vadd.f32 %v158, %v164
    %166 = vst [vmem:[#allocation9] sm:$0x1] %v165
    %v167 = vld [vmem:[#allocation9 + $0x1] sm:$0x1]
    %v168 = vmul.f32 %v152, %v152
    %v169 = vrot.slane %v168, 4
    %v170 = vadd.f32 %v168, %v169
    %v171 = vrot.slane %v170, 2
    %v172 = vadd.f32 %v170, %v171
    %v173 = vrot.slane %v172, 1
    %v174 = vadd.f32 %v172, %v173
    %v175 = vadd.f32 %v167, %v174
    %176 = vst [vmem:[#allocation9 + $0x1] sm:$0x1] %v175
    // Predicated region
    $region30: #{tpu_custom_call.1} parent=1 // pred_check
      _
    $region31: #{tpu_custom_call.1} parent=1 // pred_check_branch
      %178 = sbr.rel (0) target = $region33
    $region32: #{tpu_custom_call.1} parent=1 // pred_region
      %s180 = ssub.s32 128, 128
      %181 = vsyncadd [#allocation4], %s180
      %s183 = sshll.u32 [#allocation8], 4
      %s184 = int_to_ptr.vmem [resolvable:$true] %s183
      %186 = dma.vmem_to_hbm [thread:$0]  %s184, 128, %s3, [#allocation4]
    $region33: #{tpu_custom_call.1} parent=1 // pred_fallthru
      _
    // Predicated region
    $region34: #{tpu_custom_call.1} parent=1 // pred_check
      _
    $region35: #{tpu_custom_call.1} parent=1 // pred_check_branch
      %188 = sbr.rel (0) target = $region37
    $region36: #{tpu_custom_call.1} parent=1 // pred_region
      %s190 = ssub.s32 32, 32
      %191 = vsyncadd [#allocation10], %s190
      %s193 = sshll.u32 [#allocation9], 4
      %s194 = int_to_ptr.vmem [resolvable:$true] %s193
      %196 = dma.vmem_to_hbm [thread:$0]  %s194, 32, %s4, [#allocation10]
    $region37: #{tpu_custom_call.1} parent=1 // pred_fallthru
      _
    // Predicated region
    $region38: #{tpu_custom_call.1} parent=1 // pred_check
      _
    $region39: #{tpu_custom_call.1} parent=1 // pred_check_branch
      %198 = sbr.rel (0) target = $region41
    $region40: #{tpu_custom_call.1} parent=1 // pred_region
      %199 = dma.done [#allocation4], 128
    $region41: #{tpu_custom_call.1} parent=1 // pred_fallthru
      _
    // Predicated region
    $region42: #{tpu_custom_call.1} parent=1 // pred_check
      _
    $region43: #{tpu_custom_call.1} parent=1 // pred_check_branch
      %201 = sbr.rel (0) target = $region45
    $region44: #{tpu_custom_call.1} parent=1 // pred_region
      %202 = dma.done [#allocation10], 32
    $region45: #{tpu_custom_call.1} parent=1 // pred_fallthru
      _
    %203 = vsyncpa [#allocation3], 1
    %204 = vsyncpa [#allocation6], 1
    %205 = vsyncpa [#allocation4], 1
    %206 = vsyncpa [#allocation10], 1

</llo_original>
